<compile_context>
chip_gen: v7x
topology: tpu7x:2x2x1
jax: 0.10.0
libtpu: 0.0.40
codegen_flags: <defaults>
</compile_context>

<pallas_src>
import numpy as np

import jax
import jax.numpy as jnp
from jax.experimental import pallas as pl
from jax.experimental.pallas import tpu as pltpu

_LANE = 128
_SUBLANE = 8


def _round_up(x, m):
    return ((x + m - 1) // m) * m


def _detect_vmem():
    """Generation-aware VMEM budget (for tile sizing) and compiler limit."""
    try:
        info = pltpu.get_tpu_info()
        cap = int(getattr(info, "vmem_capacity_bytes"))
    except Exception:
        cap = 64 << 20  # conservative: assume v7x-class 64 MiB per TC
    if cap >= (100 << 20):      # v5e / v6e: 128 MiB physical VMEM
        limit = 96 << 20
    else:                        # v7x: 64 MiB physical VMEM per TC
        limit = 48 << 20
    budget = max(16 << 20, limit - (8 << 20))   # leave headroom for the compiler
    return budget, limit


_VMEM_BUDGET, _VMEM_LIMIT = _detect_vmem()


# ---------------------------------------------------------------------------
# Kernel
# ---------------------------------------------------------------------------
def _sender_kernel(x_ref, w_ref, b_ref, o_ref):
    x = x_ref[...]
    if x.dtype != w_ref.dtype:
        x = x.astype(w_ref.dtype)
    # MXU matmul with f32 accumulation; bias add + tanh in f32 (VPU/EUP).
    acc = jnp.dot(x, w_ref[...], preferred_element_type=jnp.float32)
    acc = acc + b_ref[...]          # b_ref is (1, h_pad): broadcasts over batch tile
    o_ref[...] = jnp.tanh(acc).astype(o_ref.dtype)


# ---------------------------------------------------------------------------
# One-time parameter prep (do at init, NOT per forward)
# ---------------------------------------------------------------------------
def prepare_sender_params(weight, bias, compute_dtype=jnp.float32):
    """Fold the PyTorch [n_hidden, n_inputs] -> [n_inputs, n_hidden] transpose,
    zero-pad the hidden axis to a lane-dense multiple of 128, and optionally
    cast the weight to bf16 for the MXU fast path. Bias stays f32."""
    n_hidden, n_inputs = weight.shape
    h_pad = _round_up(max(n_hidden, _LANE), _LANE)
    w_t = jnp.pad(weight.T, ((0, 0), (0, h_pad - n_hidden))).astype(compute_dtype)
    b = jnp.pad(bias, (0, h_pad - n_hidden)).astype(jnp.float32).reshape(1, h_pad)
    return w_t, b, n_hidden


# ---------------------------------------------------------------------------
# Tile sizing
# ---------------------------------------------------------------------------
def _choose_batch_tile(B, n_inputs, h_pad, x_bytes, out_bytes, w_bytes,
                       vmem_budget_bytes, max_tm=8192):
    """Largest multiple-of-8 batch tile such that
         2x (double-buffered) x tile + 2x out tile + resident weight/bias
       fit the generation-aware VMEM budget, while keeping >=2 grid steps for
       mid/large B (so both v7x TensorCores get work)."""
    # Resident weight + bias; count x2 (worst case if they end up double-buffered).
    resident = 2 * (n_inputs * h_pad * w_bytes + h_pad * 4)
    # TODO(synk): if `resident` alone exceeds the budget (huge n_inputs), add a
    # K grid axis with an f32 accumulator scratch instead of a resident weight.

    tm = _round_up(min(max_tm, max(B, _SUBLANE)), _SUBLANE)
    if B >= 2 * _SUBLANE:
        # Ensure the batch grid has at least 2 steps (v7x megacore sharding).
        tm = min(tm, _round_up(pl.cdiv(B, 2), _SUBLANE))
    while tm > _SUBLANE:
        need = resident + 2 * tm * n_inputs * x_bytes + 2 * tm * h_pad * out_bytes
        if need <= vmem_budget_bytes:
            break
        tm = _round_up(tm // 2, _SUBLANE)
    return max(_SUBLANE, tm)


# ---------------------------------------------------------------------------
# Forward
# ---------------------------------------------------------------------------
def _resident_spec(shape, single_buffered):
    """BlockSpec for a grid-invariant (VMEM-resident) operand."""
    index_map = lambda i: (0, 0)
    if single_buffered:
        try:
            return pl.BlockSpec(shape, index_map, pipeline_mode=pl.Buffered(1))
        except TypeError:
            pass  # older Pallas without pipeline_mode kwarg -> default buffering
    return pl.BlockSpec(shape, index_map)


def _build_call(tm, B, n_inputs, h_pad, out_dtype, single_buffer_params,
                cost, vmem_limit):
    grid = (pl.cdiv(B, tm),)
    return pl.pallas_call(
        _sender_kernel,
        out_shape=jax.ShapeDtypeStruct((B, h_pad), out_dtype),
        grid_spec=pltpu.PrefetchScalarGridSpec(
            num_scalar_prefetch=0,
            grid=grid,
            in_specs=[
                pl.BlockSpec((tm, n_inputs), lambda i: (i, 0)),      # x: tiled over batch
                _resident_spec((n_inputs, h_pad), single_buffer_params),  # weight
                _resident_spec((1, h_pad), single_buffer_params),         # bias
            ],
            out_specs=pl.BlockSpec((tm, h_pad), lambda i: (i, 0)),
        ),
        compiler_params=pltpu.CompilerParams(
            dimension_semantics=("parallel",),   # batch tiles shard across TCs on v7x
            vmem_limit_bytes=vmem_limit,
        ),
        cost_estimate=cost,
    )


def sender_forward(x, w_t_padded, bias_padded, *, n_hidden,
                   out_dtype=None, block_batch=None, return_padded=False):
    """x: [B, n_inputs] (f32 or bf16); w_t_padded: [n_inputs, h_pad];
       bias_padded: [1, h_pad] f32.
       Returns [B, n_hidden] (or [B, h_pad] if return_padded=True) in out_dtype
       (defaults to x.dtype)."""
    B, n_inputs = x.shape
    k_in, h_pad = w_t_padded.shape
    assert k_in == n_inputs
    out_dtype = x.dtype if out_dtype is None else np.dtype(out_dtype)

    if block_batch is not None:
        tm = block_batch
    else:
        tm = _choose_batch_tile(
            B, n_inputs, h_pad,
            x.dtype.itemsize, np.dtype(out_dtype).itemsize,
            w_t_padded.dtype.itemsize, _VMEM_BUDGET)

    cost = pl.CostEstimate(
        flops=2 * B * n_inputs * h_pad,
        transcendentals=B * h_pad,
        bytes_accessed=(x.size * x.dtype.itemsize
                        + w_t_padded.size * w_t_padded.dtype.itemsize
                        + bias_padded.size * bias_padded.dtype.itemsize
                        + B * h_pad * np.dtype(out_dtype).itemsize),
    )

    def _run(single_buffer_params):
        call = _build_call(tm, B, n_inputs, h_pad, out_dtype,
                           single_buffer_params, cost, _VMEM_LIMIT)
        return call(x, w_t_padded, bias_padded)

    try:
        out_padded = _run(True)    # single-buffered resident weight/bias
    except Exception:
        out_padded = _run(False)   # fallback: default double buffering

    if return_padded or h_pad == n_hidden:
        # Perf path: keep the lane-dense 128-padded activation; let the
        # consumer fuse the slice instead of paying an extra HBM pass.
        return out_padded
    return out_padded[:, :n_hidden]


# ---------------------------------------------------------------------------
# Demo / correctness check
# ---------------------------------------------------------------------------
if __name__ == "__main__":
    # Small shapes consistent with the module: batch=8, n_inputs=16, n_hidden=32
    B, n_inputs, n_hidden = 8, 16, 32

    key = jax.random.PRNGKey(0)
    kx, kw, kb = jax.random.split(key, 3)

    x = jax.random.normal(kx, (B, n_inputs), dtype=jnp.float32)
    # Deterministic parameter init (mimics nn.Linear uniform(-1/sqrt(fan_in), +))
    bound = float(1.0 / np.sqrt(n_inputs))
    weight = jax.random.uniform(kw, (n_hidden, n_inputs), jnp.float32, -bound, bound)
    bias = jax.random.uniform(kb, (n_hidden,), jnp.float32, -bound, bound)

    # Pure-JAX reference
    ref = jnp.tanh(x @ weight.T + bias)

    # f32 path (matches the PyTorch reference to 1e-5)
    w32, b32, nh = prepare_sender_params(weight, bias, compute_dtype=jnp.float32)
    out = sender_forward(x, w32, b32, n_hidden=nh)
    out = jax.block_until_ready(out)
    assert out.shape == (B, n_hidden)
    assert jnp.allclose(out, ref, atol=1e-5), "f32 path mismatch vs reference"

    # bf16 I/O fast path (mem-bound roofline win): bf16 x, bf16 weight, bf16
    # output, f32 bias+tanh; padded output kept lane-dense (no slice pass).
    wbf, bbf, _ = prepare_sender_params(weight, bias, compute_dtype=jnp.bfloat16)
    out_bf = sender_forward(x.astype(jnp.bfloat16), wbf, bbf, n_hidden=nh,
                            out_dtype=jnp.bfloat16, return_padded=True)
    out_bf = jax.block_until_ready(out_bf)
    assert out_bf.shape[0] == B and out_bf.shape[1] % _LANE == 0
    assert jnp.allclose(out_bf[:, :n_hidden].astype(jnp.float32), ref,
                        atol=5e-2), "bf16 path mismatch vs reference"

    print("KERNEL_OK")
</pallas_src>

<mosaic_0001>
module attributes {stable_mosaic.version = 11 : i64} {
  func.func @_sender_kernel(%arg0: i32, %arg1: memref<8x16xf32, #tpu.memory_space<vmem>>, %arg2: memref<16x128xf32, #tpu.memory_space<vmem>>, %arg3: memref<1x128xf32, #tpu.memory_space<vmem>>, %arg4: memref<8x128xf32, #tpu.memory_space<vmem>>) attributes {dimension_semantics = [#tpu.dimension_semantics<parallel>], iteration_bounds = array<i64: 1>, scalar_prefetch = 0 : i64, scratch_operands = 0 : i64, tpu.core_type = #tpu.core_type<tc>, window_params = [{transform_indices = @transform_0, window_bounds = array<i64: 8, 16>}, {pipeline_mode = #tpu.pipeline_mode<synchronous>, transform_indices = @transform_1, window_bounds = array<i64: 16, 128>}, {pipeline_mode = #tpu.pipeline_mode<synchronous>, transform_indices = @transform_2, window_bounds = array<i64: 1, 128>}, {transform_indices = @transform_3, window_bounds = array<i64: 8, 128>}]} {
    %c0 = arith.constant 0 : index
    %c0_0 = arith.constant 0 : index
    %0 = vector.load %arg1[%c0, %c0_0] : memref<8x16xf32, #tpu.memory_space<vmem>>, vector<8x16xf32>
    %c0_1 = arith.constant 0 : index
    %c0_2 = arith.constant 0 : index
    %1 = vector.load %arg2[%c0_1, %c0_2] : memref<16x128xf32, #tpu.memory_space<vmem>>, vector<16x128xf32>
    %cst = arith.constant dense<0.000000e+00> : vector<8x128xf32>
    %2 = tpu.matmul %0, %1, %cst {dimension_numbers = #tpu.dot_dimension_numbers<[1], [0], [0], [1], [0, 0, 1, 1], [], []>} : vector<8x16xf32>, vector<16x128xf32>, vector<8x128xf32> -> vector<8x128xf32>
    %c0_3 = arith.constant 0 : index
    %c0_4 = arith.constant 0 : index
    %3 = vector.load %arg3[%c0_3, %c0_4] : memref<1x128xf32, #tpu.memory_space<vmem>>, vector<1x128xf32>
    %4 = vector.broadcast %3 : vector<1x128xf32> to vector<8x128xf32>
    %5 = arith.addf %2, %4 : vector<8x128xf32>
    %6 = math.tanh %5 : vector<8x128xf32>
    %c0_5 = arith.constant 0 : index
    %c0_6 = arith.constant 0 : index
    %7 = vector.load %arg4[%c0_5, %c0_6] : memref<8x128xf32, #tpu.memory_space<vmem>>, vector<8x128xf32>
    tpu.vector_store %arg4[%c0_5, %c0_6], %6 {strides = array<i32>} : memref<8x128xf32, #tpu.memory_space<vmem>>, vector<8x128xf32>,
    return
  }
  func.func @transform_0(%arg0: i32) -> (i32, i32) {
    %c0_i32 = arith.constant 0 : i32
    %c0_i32_0 = arith.constant 0 : i32
    return %arg0, %c0_i32 : i32, i32
  }
  func.func @transform_1(%arg0: i32) -> (i32, i32) {
    %c0_i32 = arith.constant 0 : i32
    %c0_i32_0 = arith.constant 0 : i32
    %c0_i32_1 = arith.constant 0 : i32
    return %c0_i32, %c0_i32_0 : i32, i32
  }
  func.func @transform_2(%arg0: i32) -> (i32, i32) {
    %c0_i32 = arith.constant 0 : i32
    %c0_i32_0 = arith.constant 0 : i32
    %c0_i32_1 = arith.constant 0 : i32
    return %c0_i32, %c0_i32_0 : i32, i32
  }
  func.func @transform_3(%arg0: i32) -> (i32, i32) {
    %c0_i32 = arith.constant 0 : i32
    %c0_i32_0 = arith.constant 0 : i32
    return %arg0, %c0_i32 : i32, i32
  }
}

module attributes {stable_mosaic.version = 11 : i64} {
  func.func @_sender_kernel(%arg0: i32, %arg1: memref<8x16xf32, #tpu.memory_space<vmem>>, %arg2: memref<16x128xf32, #tpu.memory_space<vmem>>, %arg3: memref<1x128xf32, #tpu.memory_space<vmem>>, %arg4: memref<8x128xf32, #tpu.memory_space<vmem>>) attributes {dimension_semantics = [#tpu.dimension_semantics<parallel>], iteration_bounds = array<i64: 1>, scalar_prefetch = 0 : i64, scratch_operands = 0 : i64, tpu.core_type = #tpu.core_type<tc>, window_params = [{transform_indices = @transform_0, window_bounds = array<i64: 8, 16>}, {pipeline_mode = #tpu.pipeline_mode<synchronous>, transform_indices = @transform_1, window_bounds = array<i64: 16, 128>}, {pipeline_mode = #tpu.pipeline_mode<synchronous>, transform_indices = @transform_2, window_bounds = array<i64: 1, 128>}, {transform_indices = @transform_3, window_bounds = array<i64: 8, 128>}]} {
    %c0 = arith.constant 0 : index
    %c0_0 = arith.constant 0 : index
    %0 = vector.load %arg1[%c0, %c0_0] : memref<8x16xf32, #tpu.memory_space<vmem>>, vector<8x16xf32>
    %c0_1 = arith.constant 0 : index
    %c0_2 = arith.constant 0 : index
    %1 = vector.load %arg2[%c0_1, %c0_2] : memref<16x128xf32, #tpu.memory_space<vmem>>, vector<16x128xf32>
    %cst = arith.constant dense<0.000000e+00> : vector<8x128xf32>
    %2 = tpu.matmul %0, %1, %cst {dimension_numbers = #tpu.dot_dimension_numbers<[1], [0], [0], [1], [0, 0, 1, 1], [], []>} : vector<8x16xf32>, vector<16x128xf32>, vector<8x128xf32> -> vector<8x128xf32>
    %c0_3 = arith.constant 0 : index
    %c0_4 = arith.constant 0 : index
    %3 = vector.load %arg3[%c0_3, %c0_4] : memref<1x128xf32, #tpu.memory_space<vmem>>, vector<1x128xf32>
    %4 = vector.broadcast %3 : vector<1x128xf32> to vector<8x128xf32>
    %5 = arith.addf %2, %4 : vector<8x128xf32>
    %6 = math.tanh %5 : vector<8x128xf32>
    %c0_5 = arith.constant 0 : index
    %c0_6 = arith.constant 0 : index
    %7 = vector.load %arg4[%c0_5, %c0_6] : memref<8x128xf32, #tpu.memory_space<vmem>>, vector<8x128xf32>
    tpu.vector_store %arg4[%c0_5, %c0_6], %6 {strides = array<i32>} : memref<8x128xf32, #tpu.memory_space<vmem>>, vector<8x128xf32>,
    return
  }
  func.func @transform_0(%arg0: i32) -> (i32, i32) {
    %c0_i32 = arith.constant 0 : i32
    %c0_i32_0 = arith.constant 0 : i32
    return %arg0, %c0_i32 : i32, i32
  }
  func.func @transform_1(%arg0: i32) -> (i32, i32) {
    %c0_i32 = arith.constant 0 : i32
    %c0_i32_0 = arith.constant 0 : i32
    %c0_i32_1 = arith.constant 0 : i32
    return %c0_i32, %c0_i32_0 : i32, i32
  }
  func.func @transform_2(%arg0: i32) -> (i32, i32) {
    %c0_i32 = arith.constant 0 : i32
    %c0_i32_0 = arith.constant 0 : i32
    %c0_i32_1 = arith.constant 0 : i32
    return %c0_i32, %c0_i32_0 : i32, i32
  }
  func.func @transform_3(%arg0: i32) -> (i32, i32) {
    %c0_i32 = arith.constant 0 : i32
    %c0_i32_0 = arith.constant 0 : i32
    return %arg0, %c0_i32 : i32, i32
  }
}

</mosaic_0001>

<llo_original>
// kernel: tpu_custom_call.1
$region0: #{tpu_custom_call.1}
  #allocation0 [shape = 'u32[]', space=smem, size = 0x4, offset = 0x4, fixed_abs, tag = 'smem constant byte address 0x4 - core index']
  #allocation1 [shape = 'u32[144,128]{1,0:T(1,128)}', space=vmem, size = 0x12000, scoped, tag = 'internal scratch']
  %s0 = inlined_call_operand.hbm [shape: f32[8,16], index: 0, kind: input, shape index: {}]
  %s1 = inlined_call_operand.hbm [shape: f32[16,128], index: 1, kind: input, shape index: {}]
  %s2 = inlined_call_operand.vmem [shape: f32[1,128], index: 2, kind: input, shape index: {}]
  %s3 = inlined_call_operand.hbm [shape: f32[8,128], index: 3, kind: output, shape index: {}]
  %s4 = sld [smem:[#allocation0]]
  $region30: #{tpu_custom_call.1} parent=0
    _
  %s6 = ssub.s32 1, %s4
  %s7 = scalar_select 0, %s6, %s4
  $region1: #{tpu_custom_call.1} parent=0
    #allocation2 [shape = 'u8[4096]{0}', space=vmem, size = 0x1000, scoped, tag = 'input window, operand 0, single buffered']
    #allocation3 [shape = 's32[1]{0}', space=sflag, size = 0x4, scoped, tag = 'scoped memory for tpu_custom_call.1']
    #allocation4 [shape = 's32[1]{0}', space=sflag, size = 0x4, scoped, tag = 'scoped memory for tpu_custom_call.1']
    #allocation5 [shape = 'u8[8192]{0}', space=vmem, size = 0x2000, scoped, tag = 'input window, operand 1, single buffered']
    #allocation6 [shape = 's32[1]{0}', space=sflag, size = 0x4, scoped, tag = 'scoped memory for tpu_custom_call.1']
    #allocation7 [shape = 'u8[4096]{0}', space=vmem, size = 0x1000, scoped, tag = 'output window, operand 0, single buffered']
    %8 = vsyncpa [#allocation3], 0
    %9 = vsyncpa [#allocation6], 0
    %10 = vsyncpa [#allocation4], 0
    // Predicated region
    $region2: #{tpu_custom_call.1} parent=1 // pred_check
      _
    $region3: #{tpu_custom_call.1} parent=1 // pred_check_branch
      %12 = sbr.rel (0) target = $region5
    $region4: #{tpu_custom_call.1} parent=1 // pred_region
      %s14 = ssub.s32 128, 128
      %15 = vsyncadd [#allocation3], %s14
      %s17 = sshll.u32 [#allocation2], 4
      %s18 = int_to_ptr.vmem [resolvable:$true] %s17
      %20 = dma.hbm_to_vmem [thread:$0]  %s0, 128, %s18, [#allocation3]
    $region5: #{tpu_custom_call.1} parent=1 // pred_fallthru
      _
    // Predicated region
    $region6: #{tpu_custom_call.1} parent=1 // pred_check
      _
    $region7: #{tpu_custom_call.1} parent=1 // pred_check_branch
      %22 = sbr.rel (0) target = $region9
    $region8: #{tpu_custom_call.1} parent=1 // pred_region
      %s24 = ssub.s32 256, 256
      %25 = vsyncadd [#allocation6], %s24
      %s26 = sshll.u32 [#allocation5], 4
      %s27 = int_to_ptr.vmem [resolvable:$true] %s26
      %32 = dma.hbm_to_vmem [thread:$0]  %s1, 256, %s27, [#allocation6], 128, 128, 8
    $region9: #{tpu_custom_call.1} parent=1 // pred_fallthru
      _
    // Predicated region
    $region10: #{tpu_custom_call.1} parent=1 // pred_check
      _
    $region11: #{tpu_custom_call.1} parent=1 // pred_check_branch
      %34 = sbr.rel (0) target = $region13
    $region12: #{tpu_custom_call.1} parent=1 // pred_region
      _
    $region13: #{tpu_custom_call.1} parent=1 // pred_fallthru
      _
    // Predicated region
    $region14: #{tpu_custom_call.1} parent=1 // pred_check
      _
    $region15: #{tpu_custom_call.1} parent=1 // pred_check_branch
      %36 = sbr.rel (0) target = $region17
    $region16: #{tpu_custom_call.1} parent=1 // pred_region
      %37 = dma.done [#allocation3], 128
    $region17: #{tpu_custom_call.1} parent=1 // pred_fallthru
      _
    // Predicated region
    $region18: #{tpu_custom_call.1} parent=1 // pred_check
      _
    $region19: #{tpu_custom_call.1} parent=1 // pred_check_branch
      %39 = sbr.rel (0) target = $region21
    $region20: #{tpu_custom_call.1} parent=1 // pred_region
      %40 = dma.done [#allocation6], 256
    $region21: #{tpu_custom_call.1} parent=1 // pred_fallthru
      _
    %v41 = vld [vmem:[#allocation2] sm:$0xff]
    %v42 = vld [vmem:[#allocation5] sm:$0xff]
    %v43 = vld [vmem:[#allocation5 + $0x8] sm:$0xff]
    %v44 = vld [vmem:[%s2] sm:$0x1]
    %v46 = vlaneseq
    %v47 = vshrl.u32 %v46, 7
    %v48 = vsub.s32 0, %v47
    %v49 = vrot.slane %v44, %v48
    %vm51 = vcmask 130048
    %v53 = vsel %vm51, %v41, 0
    %55 = vmatprep.subr.mxu0 0.0
    %56 = vmatpush1.msra.mxu0 %v42
    %57 = vmatprep.subr.mxu0 0.0
    %58 = vmatpush1.msra.mxu0 %v43
    %59 = vmatprep.subr.mxu0 0.0
    %60 = vmatpush1.msra.mxu0 0.0
    %61 = vmatprep.subr.mxu0 0.0
    %62 = vmatpush1.msra.mxu0 0.0
    %63 = vmatprep.subr.mxu0 0.0
    %64 = vmatpush1.msra.mxu0 0.0
    %65 = vmatprep.subr.mxu0 0.0
    %66 = vmatpush1.msra.mxu0 0.0
    %67 = vmatprep.subr.mxu0 0.0
    %68 = vmatpush1.msra.mxu0 0.0
    %69 = vmatprep.subr.mxu0 0.0
    %70 = vmatpush1.msra.mxu0 0.0
    %71 = vmatprep.subr.mxu0 0.0
    %72 = vmatpush1.msra.mxu0 0.0
    %73 = vmatprep.subr.mxu0 0.0
    %74 = vmatpush1.msra.mxu0 0.0
    %75 = vmatprep.subr.mxu0 0.0
    %76 = vmatpush1.msra.mxu0 0.0
    %77 = vmatprep.subr.mxu0 0.0
    %78 = vmatpush1.msra.mxu0 0.0
    %79 = vmatprep.subr.mxu0 0.0
    %80 = vmatpush1.msra.mxu0 0.0
    %81 = vmatprep.subr.mxu0 0.0
    %82 = vmatpush1.msra.mxu0 0.0
    %83 = vmatprep.subr.mxu0 0.0
    %84 = vmatpush1.msra.mxu0 0.0
    %85 = vmatprep.subr.mxu0 0.0
    %86 = vmatpush1.msra.mxu0 0.0
    %87 = vmatprep.subr.mxu0 0.0
    %88 = vmatpush1.msra.mxu0 0.0
    %89 = vmatprep.subr.mxu0 0.0
    %90 = vmatpush1.msra.mxu0 0.0
    %91 = vmatprep.subr.mxu0 0.0
    %92 = vmatpush1.msra.mxu0 0.0
    %93 = vmatprep.subr.mxu0 0.0
    %94 = vmatpush1.msra.mxu0 0.0
    %95 = vmatprep.subr.mxu0 0.0
    %96 = vmatpush1.msra.mxu0 0.0
    %97 = vmatprep.subr.mxu0 0.0
    %98 = vmatpush1.msra.mxu0 0.0
    %99 = vmatprep.subr.mxu0 0.0
    %100 = vmatpush1.msra.mxu0 0.0
    %101 = vmatprep.subr.mxu0 0.0
    %102 = vmatpush1.msra.mxu0 0.0
    %103 = vmatprep.subr.mxu0 0.0
    %104 = vmatpush1.msra.mxu0 0.0
    %105 = vmatprep.subr.mxu0 0.0
    %106 = vmatpush1.msra.mxu0 0.0
    %107 = vmatprep.subr.mxu0 0.0
    %108 = vmatpush1.msra.mxu0 0.0
    %109 = vmatprep.subr.mxu0 0.0
    %110 = vmatpush1.msra.mxu0 0.0
    %111 = vmatprep.subr.mxu0 0.0
    %112 = vmatpush1.msra.mxu0 0.0
    %113 = vmatprep.subr.mxu0 0.0
    %114 = vmatpush1.msra.mxu0 0.0
    %115 = vmatprep.subr.mxu0 0.0
    %116 = vmatpush1.msra.mxu0 0.0
    %117 = vmatprep.subr.mxu0 0.0
    %118 = vmatpush1.msra.mxu0 0.0
    %119 = vmatprep.mubr.f32.mxu0 0.0
    %120 = vmatmul.mubr.f32.gmra.mrb[0].mxu0 %v53
    %v121 = vpop.f32.mrb[0].mxu0
    %v122 = vadd.f32 %v49, %v121
    %v123 = vpop.f32.mrb[0].mxu0
    %124 = vdwg.mxu0
    %v125 = vtanh.pop %v122
    %126 = vst [vmem:[#allocation7] sm:$0xff] %v125
    // Predicated region
    $region22: #{tpu_custom_call.1} parent=1 // pred_check
      _
    $region23: #{tpu_custom_call.1} parent=1 // pred_check_branch
      %128 = sbr.rel (0) target = $region25
    $region24: #{tpu_custom_call.1} parent=1 // pred_region
      %s130 = ssub.s32 128, 128
      %131 = vsyncadd [#allocation4], %s130
      %s133 = sshll.u32 [#allocation7], 4
      %s134 = int_to_ptr.vmem [resolvable:$true] %s133
      %136 = dma.vmem_to_hbm [thread:$0]  %s134, 128, %s3, [#allocation4]
    $region25: #{tpu_custom_call.1} parent=1 // pred_fallthru
      _
    // Predicated region
    $region26: #{tpu_custom_call.1} parent=1 // pred_check
      _
    $region27: #{tpu_custom_call.1} parent=1 // pred_check_branch
      %138 = sbr.rel (0) target = $region29
    $region28: #{tpu_custom_call.1} parent=1 // pred_region
      %139 = dma.done [#allocation4], 128
    $region29: #{tpu_custom_call.1} parent=1 // pred_fallthru
      _
    %140 = vsyncpa [#allocation3], 1
    %141 = vsyncpa [#allocation6], 1
    %142 = vsyncpa [#allocation4], 1

// kernel: tpu_custom_call.1
$region0: #{tpu_custom_call.1}
  #allocation0 [shape = 'u32[]', space=smem, size = 0x4, offset = 0x4, fixed_abs, tag = 'smem constant byte address 0x4 - core index']
  #allocation1 [shape = 'u32[144,128]{1,0:T(1,128)}', space=vmem, size = 0x12000, scoped, tag = 'internal scratch']
  %s0 = inlined_call_operand.hbm [shape: f32[8,16], index: 0, kind: input, shape index: {}]
  %s1 = inlined_call_operand.hbm [shape: f32[16,128], index: 1, kind: input, shape index: {}]
  %s2 = inlined_call_operand.vmem [shape: f32[1,128], index: 2, kind: input, shape index: {}]
  %s3 = inlined_call_operand.hbm [shape: f32[8,128], index: 3, kind: output, shape index: {}]
  %s4 = sld [smem:[#allocation0]]
  $region30: #{tpu_custom_call.1} parent=0
    _
  %s6 = ssub.s32 1, %s4
  %s7 = scalar_select 0, %s6, %s4
  $region1: #{tpu_custom_call.1} parent=0
    #allocation2 [shape = 'u8[4096]{0}', space=vmem, size = 0x1000, scoped, tag = 'input window, operand 0, single buffered']
    #allocation3 [shape = 's32[1]{0}', space=sflag, size = 0x4, scoped, tag = 'scoped memory for tpu_custom_call.1']
    #allocation4 [shape = 's32[1]{0}', space=sflag, size = 0x4, scoped, tag = 'scoped memory for tpu_custom_call.1']
    #allocation5 [shape = 'u8[8192]{0}', space=vmem, size = 0x2000, scoped, tag = 'input window, operand 1, single buffered']
    #allocation6 [shape = 's32[1]{0}', space=sflag, size = 0x4, scoped, tag = 'scoped memory for tpu_custom_call.1']
    #allocation7 [shape = 'u8[4096]{0}', space=vmem, size = 0x1000, scoped, tag = 'output window, operand 0, single buffered']
    %8 = vsyncpa [#allocation3], 0
    %9 = vsyncpa [#allocation6], 0
    %10 = vsyncpa [#allocation4], 0
    // Predicated region
    $region2: #{tpu_custom_call.1} parent=1 // pred_check
      _
    $region3: #{tpu_custom_call.1} parent=1 // pred_check_branch
      %12 = sbr.rel (0) target = $region5
    $region4: #{tpu_custom_call.1} parent=1 // pred_region
      %s14 = ssub.s32 128, 128
      %15 = vsyncadd [#allocation3], %s14
      %s17 = sshll.u32 [#allocation2], 4
      %s18 = int_to_ptr.vmem [resolvable:$true] %s17
      %20 = dma.hbm_to_vmem [thread:$0]  %s0, 128, %s18, [#allocation3]
    $region5: #{tpu_custom_call.1} parent=1 // pred_fallthru
      _
    // Predicated region
    $region6: #{tpu_custom_call.1} parent=1 // pred_check
      _
    $region7: #{tpu_custom_call.1} parent=1 // pred_check_branch
      %22 = sbr.rel (0) target = $region9
    $region8: #{tpu_custom_call.1} parent=1 // pred_region
      %s24 = ssub.s32 256, 256
      %25 = vsyncadd [#allocation6], %s24
      %s26 = sshll.u32 [#allocation5], 4
      %s27 = int_to_ptr.vmem [resolvable:$true] %s26
      %32 = dma.hbm_to_vmem [thread:$0]  %s1, 256, %s27, [#allocation6], 128, 128, 8
    $region9: #{tpu_custom_call.1} parent=1 // pred_fallthru
      _
    // Predicated region
    $region10: #{tpu_custom_call.1} parent=1 // pred_check
      _
    $region11: #{tpu_custom_call.1} parent=1 // pred_check_branch
      %34 = sbr.rel (0) target = $region13
    $region12: #{tpu_custom_call.1} parent=1 // pred_region
      _
    $region13: #{tpu_custom_call.1} parent=1 // pred_fallthru
      _
    // Predicated region
    $region14: #{tpu_custom_call.1} parent=1 // pred_check
      _
    $region15: #{tpu_custom_call.1} parent=1 // pred_check_branch
      %36 = sbr.rel (0) target = $region17
    $region16: #{tpu_custom_call.1} parent=1 // pred_region
      %37 = dma.done [#allocation3], 128
    $region17: #{tpu_custom_call.1} parent=1 // pred_fallthru
      _
    // Predicated region
    $region18: #{tpu_custom_call.1} parent=1 // pred_check
      _
    $region19: #{tpu_custom_call.1} parent=1 // pred_check_branch
      %39 = sbr.rel (0) target = $region21
    $region20: #{tpu_custom_call.1} parent=1 // pred_region
      %40 = dma.done [#allocation6], 256
    $region21: #{tpu_custom_call.1} parent=1 // pred_fallthru
      _
    %v41 = vld [vmem:[#allocation2] sm:$0xff]
    %v42 = vld [vmem:[#allocation5] sm:$0xff]
    %v43 = vld [vmem:[#allocation5 + $0x8] sm:$0xff]
    %v44 = vld [vmem:[%s2] sm:$0x1]
    %v46 = vlaneseq
    %v47 = vshrl.u32 %v46, 7
    %v48 = vsub.s32 0, %v47
    %v49 = vrot.slane %v44, %v48
    %vm51 = vcmask 130048
    %v53 = vsel %vm51, %v41, 0
    %55 = vmatprep.subr.mxu0 0.0
    %56 = vmatpush1.msra.mxu0 %v42
    %57 = vmatprep.subr.mxu0 0.0
    %58 = vmatpush1.msra.mxu0 %v43
    %59 = vmatprep.subr.mxu0 0.0
    %60 = vmatpush1.msra.mxu0 0.0
    %61 = vmatprep.subr.mxu0 0.0
    %62 = vmatpush1.msra.mxu0 0.0
    %63 = vmatprep.subr.mxu0 0.0
    %64 = vmatpush1.msra.mxu0 0.0
    %65 = vmatprep.subr.mxu0 0.0
    %66 = vmatpush1.msra.mxu0 0.0
    %67 = vmatprep.subr.mxu0 0.0
    %68 = vmatpush1.msra.mxu0 0.0
    %69 = vmatprep.subr.mxu0 0.0
    %70 = vmatpush1.msra.mxu0 0.0
    %71 = vmatprep.subr.mxu0 0.0
    %72 = vmatpush1.msra.mxu0 0.0
    %73 = vmatprep.subr.mxu0 0.0
    %74 = vmatpush1.msra.mxu0 0.0
    %75 = vmatprep.subr.mxu0 0.0
    %76 = vmatpush1.msra.mxu0 0.0
    %77 = vmatprep.subr.mxu0 0.0
    %78 = vmatpush1.msra.mxu0 0.0
    %79 = vmatprep.subr.mxu0 0.0
    %80 = vmatpush1.msra.mxu0 0.0
    %81 = vmatprep.subr.mxu0 0.0
    %82 = vmatpush1.msra.mxu0 0.0
    %83 = vmatprep.subr.mxu0 0.0
    %84 = vmatpush1.msra.mxu0 0.0
    %85 = vmatprep.subr.mxu0 0.0
    %86 = vmatpush1.msra.mxu0 0.0
    %87 = vmatprep.subr.mxu0 0.0
    %88 = vmatpush1.msra.mxu0 0.0
    %89 = vmatprep.subr.mxu0 0.0
    %90 = vmatpush1.msra.mxu0 0.0
    %91 = vmatprep.subr.mxu0 0.0
    %92 = vmatpush1.msra.mxu0 0.0
    %93 = vmatprep.subr.mxu0 0.0
    %94 = vmatpush1.msra.mxu0 0.0
    %95 = vmatprep.subr.mxu0 0.0
    %96 = vmatpush1.msra.mxu0 0.0
    %97 = vmatprep.subr.mxu0 0.0
    %98 = vmatpush1.msra.mxu0 0.0
    %99 = vmatprep.subr.mxu0 0.0
    %100 = vmatpush1.msra.mxu0 0.0
    %101 = vmatprep.subr.mxu0 0.0
    %102 = vmatpush1.msra.mxu0 0.0
    %103 = vmatprep.subr.mxu0 0.0
    %104 = vmatpush1.msra.mxu0 0.0
    %105 = vmatprep.subr.mxu0 0.0
    %106 = vmatpush1.msra.mxu0 0.0
    %107 = vmatprep.subr.mxu0 0.0
    %108 = vmatpush1.msra.mxu0 0.0
    %109 = vmatprep.subr.mxu0 0.0
    %110 = vmatpush1.msra.mxu0 0.0
    %111 = vmatprep.subr.mxu0 0.0
    %112 = vmatpush1.msra.mxu0 0.0
    %113 = vmatprep.subr.mxu0 0.0
    %114 = vmatpush1.msra.mxu0 0.0
    %115 = vmatprep.subr.mxu0 0.0
    %116 = vmatpush1.msra.mxu0 0.0
    %117 = vmatprep.subr.mxu0 0.0
    %118 = vmatpush1.msra.mxu0 0.0
    %119 = vmatprep.mubr.f32.mxu0 0.0
    %120 = vmatmul.mubr.f32.gmra.mrb[0].mxu0 %v53
    %v121 = vpop.f32.mrb[0].mxu0
    %v122 = vadd.f32 %v49, %v121
    %v123 = vpop.f32.mrb[0].mxu0
    %124 = vdwg.mxu0
    %v125 = vtanh.pop %v122
    %126 = vst [vmem:[#allocation7] sm:$0xff] %v125
    // Predicated region
    $region22: #{tpu_custom_call.1} parent=1 // pred_check
      _
    $region23: #{tpu_custom_call.1} parent=1 // pred_check_branch
      %128 = sbr.rel (0) target = $region25
    $region24: #{tpu_custom_call.1} parent=1 // pred_region
      %s130 = ssub.s32 128, 128
      %131 = vsyncadd [#allocation4], %s130
      %s133 = sshll.u32 [#allocation7], 4
      %s134 = int_to_ptr.vmem [resolvable:$true] %s133
      %136 = dma.vmem_to_hbm [thread:$0]  %s134, 128, %s3, [#allocation4]
    $region25: #{tpu_custom_call.1} parent=1 // pred_fallthru
      _
    // Predicated region
    $region26: #{tpu_custom_call.1} parent=1 // pred_check
      _
    $region27: #{tpu_custom_call.1} parent=1 // pred_check_branch
      %138 = sbr.rel (0) target = $region29
    $region28: #{tpu_custom_call.1} parent=1 // pred_region
      %139 = dma.done [#allocation4], 128
    $region29: #{tpu_custom_call.1} parent=1 // pred_fallthru
      _
    %140 = vsyncpa [#allocation3], 1
    %141 = vsyncpa [#allocation6], 1
    %142 = vsyncpa [#allocation4], 1

</llo_original>
